<compile_context>
chip_gen: v5e
topology: v5e:2x2
jax: 0.10.0
libtpu: 0.0.40
codegen_flags: <defaults>
</compile_context>

<pallas_src>
from collections import OrderedDict

import jax
import jax.numpy as jnp
from jax.experimental import pallas as pl
from jax.experimental.pallas import tpu as pltpu

_LANE = 128
_TARGET_BLOCK_BYTES = 1 * 1024 * 1024        # ~1 MiB blocks: >=512-wide tiles (roofline plateau)
_VMEM_WORKING_SET_BYTES = 32 * 1024 * 1024   # 2*(1+K)*block_bytes kept under this on all gens
_VMEM_LIMIT_BYTES = 48 * 1024 * 1024         # explicit scoped-VMEM limit (< v7x 64 MiB physical)

_TRANSCENDENTAL_PRIMS = {
    "tanh", "exp", "exp2", "log", "log1p", "logistic", "erf", "erf_inv",
    "rsqrt", "sqrt", "sin", "cos", "pow",
}


# ---------------------------------------------------------------------------
# Small static helpers
# ---------------------------------------------------------------------------
def _sublanes_for(itemsize):
    # Sub-32-bit dtypes pack along sublanes: a full vreg is 8 rows of 32-bit,
    # i.e. 16 rows of bf16 or 32 rows of int8/fp8.
    return max(8, (8 * 4) // itemsize)


def _per_block_bytes(itemsize, rows, n_outputs):
    # K-aware budget: double-buffered (1 input + K outputs) must fit VMEM.
    budget = _VMEM_WORKING_SET_BYTES // (2 * (1 + n_outputs))
    return max(rows * _LANE * itemsize, min(_TARGET_BLOCK_BYTES, budget))


def _branch_jaxpr(fn, rows, dtype):
    # Abstract trace on a tiny dummy (no real compute); used for identity
    # detection and a rough transcendental count.
    try:
        return jax.make_jaxpr(fn)(jnp.zeros((rows, _LANE), dtype))
    except Exception:
        return None


def _is_identity(closed_jaxpr):
    if closed_jaxpr is None:
        return False
    j = closed_jaxpr.jaxpr
    return (not j.eqns and len(j.invars) == 1 and len(j.outvars) == 1
            and j.outvars[0] is j.invars[0])


def _count_transcendentals(closed_jaxpr):
    if closed_jaxpr is None:
        return 1
    return sum(1 for e in closed_jaxpr.jaxpr.eqns
               if e.primitive.name in _TRANSCENDENTAL_PRIMS)


# ---------------------------------------------------------------------------
# Layout plans: produce (slab, block_shape, grid_n, index_map, unpack)
# ---------------------------------------------------------------------------
def _plan_fast(x, rows, itemsize, per_block):
    """Layout-preserving (R, C) slab.  Only taken when the trailing dims are
    already lane/sublane aligned, so collapsing the leading dims is free (no
    HBM relayout) and the per-branch outputs reshape back for free as well."""
    if x.ndim < 2:
        return None
    cols = x.shape[-1]
    if cols % _LANE != 0 or x.shape[-2] % rows != 0:
        return None
    if rows * cols * itemsize > per_block:
        return None                        # row too wide for one block; use general path
    total_rows = x.size // cols
    nr = total_rows // rows
    max_mult = max(1, per_block // (rows * cols * itemsize))
    mult = 1
    for d in range(min(nr, max_mult), 0, -1):   # largest divisor of nr within budget
        if nr % d == 0:
            mult = d
            break
    if mult == nr and nr >= 2:
        # One block would serialize on a single v7x TensorCore; split into >= 2
        # grid steps when a small factor exists (rare prime nr keeps grid=1).
        for f in range(2, min(nr, 64) + 1):
            if nr % f == 0:
                mult = nr // f
                break
    block_rows = mult * rows
    grid_n = nr // mult
    slab = x.reshape(total_rows, cols)     # pure leading-dim collapse -> no relayout
    shape = x.shape

    def unpack(o):
        return o.reshape(shape)

    return slab, (block_rows, cols), grid_n, (lambda i: (i, 0)), unpack


def _plan_general(x, rows, itemsize, per_block):
    """Generic path: flatten + pad to a lane-dense (rows, cols) slab with
    cols = grid_n * block_cols (no divisor cliff)."""
    total = x.size
    block_cols = max(_LANE, (per_block // (rows * itemsize)) // _LANE * _LANE)
    cols_needed = pl.cdiv(total, rows)
    cols_needed = pl.cdiv(cols_needed, _LANE) * _LANE
    block_cols = min(block_cols, cols_needed)
    # Keep >= 2 grid steps when the tensor spans >= 2 lane tiles, so the
    # "parallel" axis can be sharded across both v7x TensorCores.
    if cols_needed >= 2 * _LANE:
        block_cols = min(block_cols, max(_LANE, (cols_needed // 2) // _LANE * _LANE))
    grid_n = pl.cdiv(cols_needed, block_cols)
    cols = grid_n * block_cols
    padded_total = rows * cols

    flat = x.reshape(-1)
    if padded_total != total:              # static check: pad only if ragged
        flat = jnp.pad(flat, (0, padded_total - total))
    # TODO(synk): this reshape may emit an HBM relayout copy for shapes whose
    # trailing dims are not (rows,128)-aligned; the fast path above avoids it
    # whenever the input is already aligned.
    slab = flat.reshape(rows, cols)
    shape = x.shape

    def unpack(o):
        return o.reshape(-1)[:total].reshape(shape)

    return slab, (rows, block_cols), grid_n, (lambda i: (0, i)), unpack


# ---------------------------------------------------------------------------
# Fused "parallel branches" kernel: one read of the block, K branch writes.
# ---------------------------------------------------------------------------
def _make_kernel(branch_fns):
    def kernel(x_ref, *out_refs):
        x = x_ref[...]                     # single VMEM load of the block
        for fn, o_ref in zip(branch_fns, out_refs):
            o_ref[...] = fn(x).astype(o_ref.dtype)
    return kernel


def _parallel_pallas(x, fns):
    n = len(fns)
    if n == 0:
        return []
    if x.size == 0:                        # degenerate: nothing to move
        return [fn(x) for fn in fns]

    itemsize = jnp.dtype(x.dtype).itemsize
    rows = _sublanes_for(itemsize)

    # Identity branches bypass the kernel entirely (JAX arrays are immutable),
    # saving a full HBM write each.
    jaxprs = [_branch_jaxpr(fn, rows, x.dtype) for fn in fns]
    active = [i for i, j in enumerate(jaxprs) if not _is_identity(j)]
    results = [x] * n
    if not active:
        return results

    k = len(active)
    per_block = _per_block_bytes(itemsize, rows, k)

    plan = _plan_fast(x, rows, itemsize, per_block)
    if plan is None:
        plan = _plan_general(x, rows, itemsize, per_block)
    slab, block_shape, grid_n, index_map, unpack = plan

    active_fns = [fns[i] for i in active]
    block_aval = jax.ShapeDtypeStruct(block_shape, slab.dtype)
    out_dtypes = []
    for fn in active_fns:
        # TODO(synk): this only guards the shape/dtype contract; a
        # shape-preserving but axis-dependent branch (softmax, pooling,
        # conv, ...) would still be computed block-locally and be wrong.
        aval = jax.eval_shape(fn, block_aval)
        if aval.shape != block_shape:
            raise ValueError(
                "ParallelModule branches must be elementwise / shape-preserving "
                f"callables; got output shape {aval.shape} for block {block_shape}")
        out_dtypes.append(aval.dtype)

    slab_elems = slab.size                 # padded element count the kernel moves
    bytes_accessed = slab_elems * itemsize + sum(
        slab_elems * jnp.dtype(d).itemsize for d in out_dtypes)
    transcendentals = slab_elems * sum(_count_transcendentals(jaxprs[i]) for i in active)
    cost = pl.CostEstimate(flops=slab_elems * k,
                           transcendentals=int(transcendentals),
                           bytes_accessed=int(bytes_accessed))

    spec = pl.BlockSpec(block_shape, index_map)
    outs = pl.pallas_call(
        _make_kernel(active_fns),
        out_shape=tuple(jax.ShapeDtypeStruct(slab.shape, d) for d in out_dtypes),
        grid=(grid_n,),
        in_specs=[spec],
        out_specs=tuple(spec for _ in out_dtypes),
        compiler_params=pltpu.CompilerParams(
            dimension_semantics=("parallel",),
            vmem_limit_bytes=_VMEM_LIMIT_BYTES),
        cost_estimate=cost,
    )(slab)
    if not isinstance(outs, (list, tuple)):
        outs = (outs,)
    for pos, o in zip(active, outs):
        results[pos] = unpack(o)
    return results


# ---------------------------------------------------------------------------
# ParallelModule: JAX/Pallas port of wml.wtorch.nn.ParallelModule.
#   forward(x) -> [m(x) for m in submodules], all fused into one kernel.
# TODO(synk): arbitrary weighted nn.Module branches (conv/linear/...) have no
# generic Pallas translation here; only block-local (elementwise) callables
# are supported by the fused kernel.
# ---------------------------------------------------------------------------
class ParallelModule:
    def __init__(self, *args):
        self._modules = OrderedDict()
        if len(args) == 1 and isinstance(args[0], (OrderedDict, dict)):
            for key, module in args[0].items():
                self._modules[str(key)] = module
        else:
            for idx, module in enumerate(args):
                self._modules[str(idx)] = module

    def __call__(self, x):
        return _parallel_pallas(x, list(self._modules.values()))


# ---------------------------------------------------------------------------
if __name__ == "__main__":
    key = jax.random.PRNGKey(0)
    x = jax.random.normal(key, (2, 4, 16, 16), dtype=jnp.float32)   # NCHW

    identity = lambda t: t
    relu = lambda t: jnp.maximum(t, 0.0)
    scale2 = lambda t: t * 2.0
    tanh = jnp.tanh

    # Positional construction (identity is returned directly, 3 fused branches).
    mod = ParallelModule(identity, relu, scale2, tanh)
    outs = jax.block_until_ready(mod(x))
    refs = [identity(x), relu(x), scale2(x), tanh(x)]
    assert len(outs) == len(refs)
    for o, r in zip(outs, refs):
        assert o.shape == x.shape and o.dtype == r.dtype
        assert jnp.allclose(o, r, rtol=1e-6, atol=1e-6), "branch mismatch"

    # Dict construction path (OrderedDict ctor branch).
    mod_d = ParallelModule(OrderedDict([("id", identity), ("relu", relu)]))
    outs_d = jax.block_until_ready(mod_d(x))
    assert jnp.allclose(outs_d[0], x)
    assert jnp.allclose(outs_d[1], jnp.maximum(x, 0.0))

    # Lane/sublane-aligned input exercises the no-relayout fast path.
    x2 = jax.random.normal(jax.random.PRNGKey(1), (2, 16, 256), dtype=jnp.float32)
    outs2 = jax.block_until_ready(ParallelModule(relu, tanh)(x2))
    assert jnp.allclose(outs2[0], jnp.maximum(x2, 0.0), rtol=1e-6, atol=1e-6)
    assert jnp.allclose(outs2[1], jnp.tanh(x2), rtol=1e-5, atol=1e-5)

    # bf16 exercises the dtype-aware (16-row) sublane packing.
    x3 = jax.random.normal(jax.random.PRNGKey(2), (4, 32, 128)).astype(jnp.bfloat16)
    outs3 = jax.block_until_ready(ParallelModule(relu, scale2)(x3))
    assert jnp.allclose(outs3[0].astype(jnp.float32),
                        jnp.maximum(x3, 0.0).astype(jnp.float32), atol=1e-2)
    assert jnp.allclose(outs3[1].astype(jnp.float32),
                        (x3 * 2.0).astype(jnp.float32), atol=1e-2)

    print("KERNEL_OK")
</pallas_src>

<mosaic_0001>
module attributes {stable_mosaic.version = 11 : i64} {
  func.func @kernel(%arg0: i32, %arg1: memref<8x128xf32, #tpu.memory_space<vmem>>, %arg2: memref<8x128xf32, #tpu.memory_space<vmem>>, %arg3: memref<8x128xf32, #tpu.memory_space<vmem>>, %arg4: memref<8x128xf32, #tpu.memory_space<vmem>>) attributes {dimension_semantics = [#tpu.dimension_semantics<parallel>], iteration_bounds = array<i64: 2>, scalar_prefetch = 0 : i64, scratch_operands = 0 : i64, tpu.core_type = #tpu.core_type<tc>, window_params = [{transform_indices = @transform_0, window_bounds = array<i64: 8, 128>}, {transform_indices = @transform_1, window_bounds = array<i64: 8, 128>}, {transform_indices = @transform_2, window_bounds = array<i64: 8, 128>}, {transform_indices = @transform_3, window_bounds = array<i64: 8, 128>}]} {
    %c0 = arith.constant 0 : index
    %c0_0 = arith.constant 0 : index
    %0 = vector.load %arg1[%c0, %c0_0] : memref<8x128xf32, #tpu.memory_space<vmem>>, vector<8x128xf32>
    %cst = arith.constant 0.000000e+00 : f32
    %1 = vector.broadcast %cst : f32 to vector<8x128xf32>
    %2 = arith.maximumf %0, %1 : vector<8x128xf32>
    %c0_1 = arith.constant 0 : index
    %c0_2 = arith.constant 0 : index
    %3 = vector.load %arg2[%c0_1, %c0_2] : memref<8x128xf32, #tpu.memory_space<vmem>>, vector<8x128xf32>
    tpu.vector_store %arg2[%c0_1, %c0_2], %2 {strides = array<i32>} : memref<8x128xf32, #tpu.memory_space<vmem>>, vector<8x128xf32>,
    %cst_3 = arith.constant 2.000000e+00 : f32
    %4 = vector.broadcast %cst_3 : f32 to vector<8x128xf32>
    %5 = arith.mulf %0, %4 : vector<8x128xf32>
    %c0_4 = arith.constant 0 : index
    %c0_5 = arith.constant 0 : index
    %6 = vector.load %arg3[%c0_4, %c0_5] : memref<8x128xf32, #tpu.memory_space<vmem>>, vector<8x128xf32>
    tpu.vector_store %arg3[%c0_4, %c0_5], %5 {strides = array<i32>} : memref<8x128xf32, #tpu.memory_space<vmem>>, vector<8x128xf32>,
    %7 = math.tanh %0 : vector<8x128xf32>
    %c0_6 = arith.constant 0 : index
    %c0_7 = arith.constant 0 : index
    %8 = vector.load %arg4[%c0_6, %c0_7] : memref<8x128xf32, #tpu.memory_space<vmem>>, vector<8x128xf32>
    tpu.vector_store %arg4[%c0_6, %c0_7], %7 {strides = array<i32>} : memref<8x128xf32, #tpu.memory_space<vmem>>, vector<8x128xf32>,
    return
  }
  func.func @transform_0(%arg0: i32) -> (i32, i32) {
    %c0_i32 = arith.constant 0 : i32
    %c0_i32_0 = arith.constant 0 : i32
    return %c0_i32, %arg0 : i32, i32
  }
  func.func @transform_1(%arg0: i32) -> (i32, i32) {
    %c0_i32 = arith.constant 0 : i32
    %c0_i32_0 = arith.constant 0 : i32
    return %c0_i32, %arg0 : i32, i32
  }
  func.func @transform_2(%arg0: i32) -> (i32, i32) {
    %c0_i32 = arith.constant 0 : i32
    %c0_i32_0 = arith.constant 0 : i32
    return %c0_i32, %arg0 : i32, i32
  }
  func.func @transform_3(%arg0: i32) -> (i32, i32) {
    %c0_i32 = arith.constant 0 : i32
    %c0_i32_0 = arith.constant 0 : i32
    return %c0_i32, %arg0 : i32, i32
  }
}

</mosaic_0001>

<llo_original>
// kernel: tpu_custom_call.1
$region0: #{tpu_custom_call.1}
  #allocation0 [shape = 'u32[]', space=smem, size = 0x4, offset = 0x4, fixed_abs, tag = 'smem constant byte address 0x4 - core index']
  #allocation1 [shape = 'u32[72,128]{1,0:T(1,128)}', space=vmem, size = 0x9000, scoped, tag = 'internal scratch']
  %s0 = inlined_call_operand.hbm [shape: f32[8,256], index: 0, kind: input, shape index: {}]
  %s1 = inlined_call_operand.hbm [shape: f32[8,256], index: 1, kind: output, shape index: {0}]
  %s2 = inlined_call_operand.hbm [shape: f32[8,256], index: 2, kind: output, shape index: {1}]
  %s3 = inlined_call_operand.hbm [shape: f32[8,256], index: 3, kind: output, shape index: {2}]
  %4 = xla_tuple %s1, %s2, %s3
  %s5 = sld [smem:[#allocation0]]
  $region57: #{tpu_custom_call.1} parent=0
    _
  %s7 = ssub.s32 1, %s5
  %s8 = scalar_select 0, %s7, %s5
  $region1: #{tpu_custom_call.1} parent=0
    #allocation2 [shape = 'u8[8192]{0}', space=vmem, size = 0x2000, scoped, tag = 'input window, operand 0']
    #allocation3 [shape = 's32[2]{0}', space=sflag, size = 0x8, scoped, tag = 'scoped memory for tpu_custom_call.1']
    #allocation4 [shape = 's32[2]{0}', space=sflag, size = 0x8, scoped, tag = 'scoped memory for tpu_custom_call.1']
    #allocation5 [shape = 'u8[8192]{0}', space=vmem, size = 0x2000, scoped, tag = 'output window, operand 0']
    #allocation6 [shape = 'u8[8192]{0}', space=vmem, size = 0x2000, scoped, tag = 'output window, operand 1']
    #allocation7 [shape = 's32[2]{0}', space=sflag, size = 0x8, scoped, tag = 'scoped memory for tpu_custom_call.1']
    #allocation8 [shape = 'u8[8192]{0}', space=vmem, size = 0x2000, scoped, tag = 'output window, operand 2']
    %9 = vsyncpa [#allocation3], 0
    %s10 = scalar_lea.sflag [#allocation3], 1
    %11 = vsyncpa %s10, 0
    %12 = vsyncpa [#allocation4], 0
    %s13 = scalar_lea.sflag [#allocation4], 1
    %14 = vsyncpa %s13, 0
    %15 = vsyncpa [#allocation7], 0
    %s16 = scalar_lea.sflag [#allocation7], 1
    %17 = vsyncpa %s16, 0
    loop: start=0, step=1, limit=4
    $region2: #{tpu_custom_call.1} parent=1 // loop_pre_header
      _
    $region3: #{tpu_custom_call.1} parent=1 // loop_header
      %s19 = sphi 0, %s23
      %p20 = scmp.ge.s32.totalorder %s19, 4
      %s29 = sphi 0, %s31
      %s32 = sphi 0, %s29
      %s33 = sphi 0, %s32
      %s49 = sphi 0, %s33
      %s55 = sphi 0, %s57
      %s58 = sphi 0, %s55
      %s59 = sphi 0, %s58
      %s75 = sphi 0, %s59
      %s81 = sphi 0, %s83
      %s84 = sphi 0, %s81
      %s85 = sphi 0, %s84
      %s101 = sphi 0, %s85
      %s107 = sphi 0, %s109
      %s110 = sphi 0, %s107
      %s111 = sphi 0, %s110
      %s127 = sphi 0, %s111
    $region4: #{tpu_custom_call.1} parent=1 // loop_header_branch
      %22 = sbr.rel (%p20) target = $region8
    $region5: #{tpu_custom_call.1} parent=1 // loop_body
      %s24 = ssub.s32 %s19, 1
      %s25 = ssub.s32 %s19, 2
      %s26 = sadd.s32 %s19, 1
      %s27 = ssub.s32 %s19, %s26
      %p28 = scmp.eq.s32.totalorder %s27, 0
      %s30 = sadd.s32 %s29, 1
      %s31 = scalar_select %p28, %s29, %s30
      %p34 = pneg %p28
      %p35 = scmp.eq.s32.totalorder %s19, 1
      %p36 = por %p34, %p35
      %p37 = scmp.ne.s32.totalorder %s29, %s32
      %p38 = scmp.eq.s32.totalorder %s19, 0
      %p39 = por %p37, %p38
      %p40 = scmp.ne.s32.totalorder %s29, %s32
      %p41 = scmp.eq.s32.totalorder %s24, 1
      %p42 = por %p40, %p41
      %p43 = scmp.ne.s32.totalorder %s32, %s33
      %p44 = scmp.eq.s32.totalorder %s24, 0
      %p45 = por %p43, %p44
      %p46 = scmp.ne.s32.totalorder %s32, %s33
      %p47 = scmp.eq.s32.totalorder %s25, 1
      %p48 = por %p46, %p47
      %p50 = scmp.ne.s32.totalorder %s33, %s49
      %p51 = scmp.eq.s32.totalorder %s25, 0
      %p52 = por %p50, %p51
      %s53 = ssub.s32 %s19, %s26
      %p54 = scmp.eq.s32.totalorder %s53, 0
      %s56 = sadd.s32 %s55, 1
      %s57 = scalar_select %p54, %s55, %s56
      %p60 = pneg %p54
      %p61 = scmp.eq.s32.totalorder %s19, 1
      %p62 = por %p60, %p61
      %p63 = scmp.ne.s32.totalorder %s55, %s58
      %p64 = scmp.eq.s32.totalorder %s19, 0
      %p65 = por %p63, %p64
      %p66 = scmp.ne.s32.totalorder %s55, %s58
      %p67 = scmp.eq.s32.totalorder %s24, 1
      %p68 = por %p66, %p67
      %p69 = scmp.ne.s32.totalorder %s58, %s59
      %p70 = scmp.eq.s32.totalorder %s24, 0
      %p71 = por %p69, %p70
      %p72 = scmp.ne.s32.totalorder %s58, %s59
      %p73 = scmp.eq.s32.totalorder %s25, 1
      %p74 = por %p72, %p73
      %p76 = scmp.ne.s32.totalorder %s59, %s75
      %p77 = scmp.eq.s32.totalorder %s25, 0
      %p78 = por %p76, %p77
      %s79 = ssub.s32 %s19, %s26
      %p80 = scmp.eq.s32.totalorder %s79, 0
      %s82 = sadd.s32 %s81, 1
      %s83 = scalar_select %p80, %s81, %s82
      %p86 = pneg %p80
      %p87 = scmp.eq.s32.totalorder %s19, 1
      %p88 = por %p86, %p87
      %p89 = scmp.ne.s32.totalorder %s81, %s84
      %p90 = scmp.eq.s32.totalorder %s19, 0
      %p91 = por %p89, %p90
      %p92 = scmp.ne.s32.totalorder %s81, %s84
      %p93 = scmp.eq.s32.totalorder %s24, 1
      %p94 = por %p92, %p93
      %p95 = scmp.ne.s32.totalorder %s84, %s85
      %p96 = scmp.eq.s32.totalorder %s24, 0
      %p97 = por %p95, %p96
      %p98 = scmp.ne.s32.totalorder %s84, %s85
      %p99 = scmp.eq.s32.totalorder %s25, 1
      %p100 = por %p98, %p99
      %p102 = scmp.ne.s32.totalorder %s85, %s101
      %p103 = scmp.eq.s32.totalorder %s25, 0
      %p104 = por %p102, %p103
      %s105 = ssub.s32 %s19, %s26
      %p106 = scmp.eq.s32.totalorder %s105, 0
      %s108 = sadd.s32 %s107, 1
      %s109 = scalar_select %p106, %s107, %s108
      %p112 = pneg %p106
      %p113 = scmp.eq.s32.totalorder %s19, 1
      %p114 = por %p112, %p113
      %p115 = scmp.ne.s32.totalorder %s107, %s110
      %p116 = scmp.eq.s32.totalorder %s19, 0
      %p117 = por %p115, %p116
      %p118 = scmp.ne.s32.totalorder %s107, %s110
      %p119 = scmp.eq.s32.totalorder %s24, 1
      %p120 = por %p118, %p119
      %p121 = scmp.ne.s32.totalorder %s110, %s111
      %p122 = scmp.eq.s32.totalorder %s24, 0
      %p123 = por %p121, %p122
      %p124 = scmp.ne.s32.totalorder %s110, %s111
      %p125 = scmp.eq.s32.totalorder %s25, 1
      %p126 = por %p124, %p125
      %p128 = scmp.ne.s32.totalorder %s111, %s127
      %p129 = scmp.eq.s32.totalorder %s25, 0
      %p130 = por %p128, %p129
      %p131 = scmp.le.s32.totalorder 1, %s19
      %p132 = scmp.lt.s32.totalorder %s19, 3
      %p133 = pnand %p131, %p132
      %p134 = pneg %p133
      // Predicated region
      $region9: #{tpu_custom_call.1} parent=5 // pred_check
        _
      $region10: #{tpu_custom_call.1} parent=5 // pred_check_branch
        %136 = sbr.rel (%p133) target = $region12
      $region11: #{tpu_custom_call.1} parent=5 // pred_region
        %s137 = ssub.s32 %s19, 1
      $region12: #{tpu_custom_call.1} parent=5 // pred_fallthru
        _
      %p138 = scmp.lt.s32.totalorder %s19, 2
      // Predicated region
      $region13: #{tpu_custom_call.1} parent=5 // pred_check
        %p139 = pneg %p138
      $region14: #{tpu_custom_call.1} parent=5 // pred_check_branch
        %141 = sbr.rel (%p139) target = $region16
      $region15: #{tpu_custom_call.1} parent=5 // pred_region
        // Predicated region
        $region17: #{tpu_custom_call.1} parent=15 // pred_check
          %p142 = pneg %p39
        $region18: #{tpu_custom_call.1} parent=15 // pred_check_branch
          %144 = sbr.rel (%p142) target = $region20
        $region19: #{tpu_custom_call.1} parent=15 // pred_region
          %s145 = sand.u32 %s29, 1
          %s146 = scalar_lea.sflag [#allocation3], %s145
          %s147 = sand.u32 %s29, 1
          %s148 = smul.addr %s147, 8
          %s149 = scalar_lea.vmem [#allocation2], %s148
          %151 = vsyncadd %s146, 0
          %s152 = smul.addr %s19, 8
          %s153 = scalar_lea.hbm %s0, %s152
          %s155 = sshll.u32 %s153, 4
          %s156 = int_to_ptr.hbm [resolvable:$true] %s155
          %s157 = sshll.u32 %s149, 4
          %s158 = int_to_ptr.vmem [resolvable:$true] %s157
          %160 = dma.hbm_to_vmem [thread:$0]  %s156, 128, %s158, %s146
        $region20: #{tpu_custom_call.1} parent=15 // pred_fallthru
          _
      $region16: #{tpu_custom_call.1} parent=5 // pred_fallthru
        _
      %p161 = scmp.le.s32.totalorder 1, %s19
      %p162 = scmp.lt.s32.totalorder %s19, 3
      %p163 = pnand %p161, %p162
      %p164 = pneg %p163
      // Predicated region
      $region21: #{tpu_custom_call.1} parent=5 // pred_check
        _
      $region22: #{tpu_custom_call.1} parent=5 // pred_check_branch
        %166 = sbr.rel (%p163) target = $region24
      $region23: #{tpu_custom_call.1} parent=5 // pred_region
        %s167 = ssub.s32 %s19, 1
        %s168 = sand.u32 %s32, 1
        %s169 = scalar_lea.sflag [#allocation3], %s168
        %s170 = sand.u32 %s32, 1
        %s171 = smul.addr %s170, 8
        %s172 = scalar_lea.vmem [#allocation2], %s171
        // Predicated region
        $region25: #{tpu_custom_call.1} parent=23 // pred_check
          %p173 = pneg %p45
        $region26: #{tpu_custom_call.1} parent=23 // pred_check_branch
          %175 = sbr.rel (%p173) target = $region28
        $region27: #{tpu_custom_call.1} parent=23 // pred_region
          %177 = dma.done %s169, 128
        $region28: #{tpu_custom_call.1} parent=23 // pred_fallthru
          _
        %s178 = sand.u32 %s32, 1
        %s179 = scalar_lea.sflag [#allocation3], %s178
        %s180 = sand.u32 %s32, 1
        %s181 = smul.addr %s180, 8
        %s182 = scalar_lea.vmem [#allocation2], %s181
        %p183 = pneg %p45
        %p184 = pneg %p42
        %p185 = pneg %p71
        %p186 = pneg %p68
        %s187 = sand.u32 %s58, 1
        %s188 = scalar_lea.sflag [#allocation4], %s187
        %s189 = sand.u32 %s58, 1
        %s190 = smul.addr %s189, 8
        %s191 = scalar_lea.vmem [#allocation5], %s190
        %p192 = pneg %p97
        %p193 = pneg %p94
        %s194 = sand.u32 %s24, 1
        %s195 = scalar_lea.sflag [#allocation7], %s194
        %s196 = sand.u32 %s84, 1
        %s197 = smul.addr %s196, 8
        %s198 = scalar_lea.vmem [#allocation6], %s197
        %p199 = pneg %p123
        %p200 = pneg %p120
        %s201 = sand.u32 %s24, 1
        %s202 = scalar_lea.sflag [#allocation7], %s201
        %s203 = sand.u32 %s110, 1
        %s204 = smul.addr %s203, 8
        %s205 = scalar_lea.vmem [#allocation8], %s204
        %v206 = vld [vmem:[%s172] sm:$0xff]
        %v207 = vmax.f32 %v206, 0.0
        %208 = vst [vmem:[%s191] sm:$0xff] %v207
        %v209 = vmul.f32 %v206, 2.0
        %210 = vst [vmem:[%s198] sm:$0xff] %v209
        %v211 = vtanh.pop %v206
        %212 = vst [vmem:[%s205] sm:$0xff] %v211
        %s213 = sand.u32 %s58, 1
        %s214 = scalar_lea.sflag [#allocation4], %s213
        %s215 = sand.u32 %s58, 1
        %s216 = smul.addr %s215, 8
        %s217 = scalar_lea.vmem [#allocation5], %s216
        %s218 = sand.u32 %s24, 1
        %s219 = scalar_lea.sflag [#allocation7], %s218
        %s220 = sand.u32 %s84, 1
        %s221 = smul.addr %s220, 8
        %s222 = scalar_lea.vmem [#allocation6], %s221
        %s223 = sand.u32 %s24, 1
        %s224 = scalar_lea.sflag [#allocation7], %s223
        %s225 = sand.u32 %s110, 1
        %s226 = smul.addr %s225, 8
        %s227 = scalar_lea.vmem [#allocation8], %s226
        // Predicated region
        $region29: #{tpu_custom_call.1} parent=23 // pred_check
          %p228 = pneg %p68
        $region30: #{tpu_custom_call.1} parent=23 // pred_check_branch
          %230 = sbr.rel (%p228) target = $region32
        $region31: #{tpu_custom_call.1} parent=23 // pred_region
          %232 = vsyncadd %s214, 0
          %s233 = smul.addr %s24, 8
          %s234 = scalar_lea.hbm %s1, %s233
          %s236 = sshll.u32 %s217, 4
          %s237 = int_to_ptr.vmem [resolvable:$true] %s236
          %s238 = sshll.u32 %s234, 4
          %s239 = int_to_ptr.hbm [resolvable:$true] %s238
          %241 = dma.vmem_to_hbm [thread:$0]  %s237, 128, %s239, %s214
        $region32: #{tpu_custom_call.1} parent=23 // pred_fallthru
          _
        // Predicated region
        $region33: #{tpu_custom_call.1} parent=23 // pred_check
          %p242 = pneg %p94
        $region34: #{tpu_custom_call.1} parent=23 // pred_check_branch
          %244 = sbr.rel (%p242) target = $region36
        $region35: #{tpu_custom_call.1} parent=23 // pred_region
          %246 = vsyncadd %s219, 0
          %s247 = smul.addr %s24, 8
          %s248 = scalar_lea.hbm %s2, %s247
          %s250 = sshll.u32 %s222, 4
          %s251 = int_to_ptr.vmem [resolvable:$true] %s250
          %s252 = sshll.u32 %s248, 4
          %s253 = int_to_ptr.hbm [resolvable:$true] %s252
          %255 = dma.vmem_to_hbm [thread:$0]  %s251, 128, %s253, %s219
        $region36: #{tpu_custom_call.1} parent=23 // pred_fallthru
          _
        // Predicated region
        $region37: #{tpu_custom_call.1} parent=23 // pred_check
          %p256 = pneg %p120
        $region38: #{tpu_custom_call.1} parent=23 // pred_check_branch
          %258 = sbr.rel (%p256) target = $region40
        $region39: #{tpu_custom_call.1} parent=23 // pred_region
          %260 = vsyncadd %s224, 0
          %s261 = smul.addr %s24, 8
          %s262 = scalar_lea.hbm %s3, %s261
          %s264 = sshll.u32 %s227, 4
          %s265 = int_to_ptr.vmem [resolvable:$true] %s264
          %s266 = sshll.u32 %s262, 4
          %s267 = int_to_ptr.hbm [resolvable:$true] %s266
          %269 = dma.vmem_to_hbm [thread:$0]  %s265, 128, %s267, %s224
        $region40: #{tpu_custom_call.1} parent=23 // pred_fallthru
          _
      $region24: #{tpu_custom_call.1} parent=5 // pred_fallthru
        _
      %p270 = scmp.le.s32.totalorder 2, %s19
      // Predicated region
      $region41: #{tpu_custom_call.1} parent=5 // pred_check
        %p271 = pneg %p270
      $region42: #{tpu_custom_call.1} parent=5 // pred_check_branch
        %273 = sbr.rel (%p271) target = $region44
      $region43: #{tpu_custom_call.1} parent=5 // pred_region
        %s274 = ssub.s32 %s19, 2
        // Predicated region
        $region45: #{tpu_custom_call.1} parent=43 // pred_check
          %p275 = pneg %p74
        $region46: #{tpu_custom_call.1} parent=43 // pred_check_branch
          %277 = sbr.rel (%p275) target = $region48
        $region47: #{tpu_custom_call.1} parent=43 // pred_region
          %s278 = sand.u32 %s59, 1
          %s279 = scalar_lea.sflag [#allocation4], %s278
          %s280 = sand.u32 %s59, 1
          %s281 = smul.addr %s280, 8
          %s282 = scalar_lea.vmem [#allocation5], %s281
          %284 = dma.done %s279, 128
        $region48: #{tpu_custom_call.1} parent=43 // pred_fallthru
          _
        // Predicated region
        $region49: #{tpu_custom_call.1} parent=43 // pred_check
          %p285 = pneg %p100
        $region50: #{tpu_custom_call.1} parent=43 // pred_check_branch
          %287 = sbr.rel (%p285) target = $region52
        $region51: #{tpu_custom_call.1} parent=43 // pred_region
          %s288 = sand.u32 %s25, 1
          %s289 = scalar_lea.sflag [#allocation7], %s288
          %s290 = sand.u32 %s85, 1
          %s291 = smul.addr %s290, 8
          %s292 = scalar_lea.vmem [#allocation6], %s291
          %294 = dma.done %s289, 128
        $region52: #{tpu_custom_call.1} parent=43 // pred_fallthru
          _
        // Predicated region
        $region53: #{tpu_custom_call.1} parent=43 // pred_check
          %p295 = pneg %p126
        $region54: #{tpu_custom_call.1} parent=43 // pred_check_branch
          %297 = sbr.rel (%p295) target = $region56
        $region55: #{tpu_custom_call.1} parent=43 // pred_region
          %s298 = sand.u32 %s25, 1
          %s299 = scalar_lea.sflag [#allocation7], %s298
          %s300 = sand.u32 %s111, 1
          %s301 = smul.addr %s300, 8
          %s302 = scalar_lea.vmem [#allocation8], %s301
          %304 = dma.done %s299, 128
        $region56: #{tpu_custom_call.1} parent=43 // pred_fallthru
          _
      $region44: #{tpu_custom_call.1} parent=5 // pred_fallthru
        _
    $region6: #{tpu_custom_call.1} parent=1 // loop_footer
      %s23 = sadd.s32 1, %s19
    $region7: #{tpu_custom_call.1} parent=1 // loop_footer_branch
      %18 = sbr.rel target = $region3
    $region8: #{tpu_custom_call.1} parent=1 // loop_exit
      _
    %305 = vsyncpa [#allocation3], 1
    %s306 = scalar_lea.sflag [#allocation3], 1
    %307 = vsyncpa %s306, 1
    %308 = vsyncpa [#allocation4], 1
    %s309 = scalar_lea.sflag [#allocation4], 1
    %310 = vsyncpa %s309, 1
    %311 = vsyncpa [#allocation7], 1
    %s312 = scalar_lea.sflag [#allocation7], 1
    %313 = vsyncpa %s312, 1

</llo_original>
